<compile_context>
chip_gen: v5e
topology: v5e:2x2
jax: 0.10.0
libtpu: 0.0.40
codegen_flags: <defaults>
</compile_context>

<pallas_src>
import jax
import jax.numpy as jnp
from jax.experimental import pallas as pl
from jax.experimental.pallas import tpu as pltpu

LN_EPS = 1e-5  # matches torch.nn.LayerNorm default


def _round_down(x, m):
    return (x // m) * m


def _gate_kernel_packed(x_ref, p_ref, seg_ref, o_ref):
    """k rows packed per 128-lane row; segmented LayerNorm via bf16 MXU passes.

    x_ref:   (TM, L) tile, L = k*F (lane-dense).
    p_ref:   (2, L) f32; row 0 = tiled ln_weight/3, row 1 = tiled (ln_bias/3 + gate_bias).
    seg_ref: (L, L) bf16 block-diagonal averaging matrix, entries 1/F (exact in bf16).
    """
    x = x_ref[...].astype(jnp.float32)
    gamma = p_ref[0:1, :]                     # (1, L)
    bias = p_ref[1:2, :]                      # (1, L)
    seg = seg_ref[...]                        # (L, L) bf16

    # Per-group mean: two DEFAULT-precision bf16 MXU passes on an exact hi/lo split
    # of x (seg itself is exactly representable, so no split needed on that side).
    x_hi = x.astype(jnp.bfloat16)
    x_lo = (x - x_hi.astype(jnp.float32)).astype(jnp.bfloat16)
    mean = (jnp.dot(x_hi, seg, preferred_element_type=jnp.float32)
            + jnp.dot(x_lo, seg, preferred_element_type=jnp.float32))

    centered = x - mean
    c2 = centered * centered
    c2_hi = c2.astype(jnp.bfloat16)
    c2_lo = (c2 - c2_hi.astype(jnp.float32)).astype(jnp.bfloat16)
    var = (jnp.dot(c2_hi, seg, preferred_element_type=jnp.float32)
           + jnp.dot(c2_lo, seg, preferred_element_type=jnp.float32))

    inv_std = jax.lax.rsqrt(var + LN_EPS)
    o_ref[...] = jax.nn.sigmoid(centered * inv_std * gamma + bias).astype(o_ref.dtype)


def _gate_kernel_reduce(x_ref, p_ref, o_ref):
    """Fallback (F >= 128 or F doesn't divide 128): plain per-row lane reduction."""
    x = x_ref[...].astype(jnp.float32)
    gamma = p_ref[0:1, :]
    bias = p_ref[1:2, :]
    mean = jnp.mean(x, axis=-1, keepdims=True)
    centered = x - mean
    var = jnp.mean(centered * centered, axis=-1, keepdims=True)
    inv_std = jax.lax.rsqrt(var + LN_EPS)
    o_ref[...] = jax.nn.sigmoid(centered * inv_std * gamma + bias).astype(o_ref.dtype)


def feature_probability_gate(x, ln_weight, ln_bias, gate_bias, *, row_tile=8192):
    """x: [batch, seq, features]; ln_weight/ln_bias/gate_bias: [features]."""
    B, S, F = x.shape
    M = B * S
    out_dtype = x.dtype

    # ---- fold constants (exact up to fp rounding) ----
    gamma_f = ln_weight.astype(jnp.float32) / 3.0
    bias_f = ln_bias.astype(jnp.float32) / 3.0 + gate_bias.astype(jnp.float32)

    # ---- lane packing ----
    if F < 128 and 128 % F == 0:
        k = 128 // F
    else:
        k = 1  # lane-sparse fallback (known perf cliff for e.g. F=96)
    L = k * F

    # ---- pad ONLY to a multiple of k (<= k-1 rows; no pad when M % k == 0) ----
    Mp = -(-M // k)
    pad_rows = Mp * k - M
    x2 = x.reshape(M, F)
    if pad_rows:
        x2 = jnp.pad(x2, ((0, pad_rows), (0, 0)))
    xp = x2.reshape(Mp, L)

    # ---- row tiling: budget covers 4 double-buffered I/O blocks plus ~6 tile-sized
    #      f32 in-kernel temporaries (hi/lo splits, mean, centered, centered^2, var)
    #      => ~10 f32 tiles worth of VMEM per row of tile. ----
    vmem_limit = 48 * 1024 * 1024          # < v7x 64 MiB physical; fine on v5e/v6e
    vmem_budget = 40 * 1024 * 1024         # headroom under vmem_limit
    max_rows = max(8, vmem_budget // (10 * 4 * L))
    row_tile = min(row_tile, max_rows)
    if Mp <= row_tile:
        row_tile = Mp                      # single block == full array (any row count legal)
    else:
        row_tile = max(8, _round_down(row_tile, 8))
    grid = (pl.cdiv(Mp, row_tile),)        # partial last block -> masked writeback

    # ---- single (2, L) parameter slab ----
    params = jnp.stack([jnp.tile(gamma_f, k), jnp.tile(bias_f, k)])   # (2, L) f32

    x_spec = pl.BlockSpec((row_tile, L), lambda i: (i, 0))
    p_spec = pl.BlockSpec((2, L), lambda i: (0, 0))
    out_spec = pl.BlockSpec((row_tile, L), lambda i: (i, 0))

    if k > 1:
        grp = jnp.arange(L, dtype=jnp.int32) // F
        seg = ((grp[:, None] == grp[None, :]).astype(jnp.float32) / F).astype(jnp.bfloat16)
        kernel = _gate_kernel_packed
        in_specs = [x_spec, p_spec, pl.BlockSpec((L, L), lambda i: (0, 0))]
        args = (xp, params, seg)
        matmul_flops = 2 * 2 * 2 * Mp * L * L     # 2 reductions x 2 bf16 passes
    else:
        kernel = _gate_kernel_reduce
        in_specs = [x_spec, p_spec]
        args = (xp, params)
        matmul_flops = 0

    itemsize = jnp.dtype(out_dtype).itemsize
    cost = pl.CostEstimate(
        flops=int(matmul_flops + 10 * M * F),
        transcendentals=int(2 * M * F + M),       # sigmoid exp/recip + per-row rsqrt
        bytes_accessed=int(2 * M * F * itemsize),
    )

    out = pl.pallas_call(
        kernel,
        out_shape=jax.ShapeDtypeStruct((Mp, L), out_dtype),
        grid_spec=pltpu.PrefetchScalarGridSpec(
            num_scalar_prefetch=0,
            grid=grid,
            in_specs=in_specs,
            out_specs=out_spec,
        ),
        compiler_params=pltpu.CompilerParams(
            # "parallel" lets v7x's two TensorCores split the row tiles; if a v7x
            # profile shows one TC idle, switch to pltpu.CORE_PARALLEL.
            dimension_semantics=("parallel",),
            vmem_limit_bytes=vmem_limit,
        ),
        cost_estimate=cost,
    )(*args)

    out = out.reshape(Mp * k, F)
    if pad_rows:
        out = out[:M]
    return out.reshape(B, S, F)


def _reference(x, ln_weight, ln_bias, gate_bias):
    xf = x.astype(jnp.float32)
    mean = jnp.mean(xf, axis=-1, keepdims=True)
    var = jnp.mean((xf - mean) ** 2, axis=-1, keepdims=True)
    xn = (xf - mean) * jax.lax.rsqrt(var + LN_EPS)
    xn = xn * ln_weight + ln_bias
    return jax.nn.sigmoid(xn / 3.0 + gate_bias).astype(x.dtype)


if __name__ == "__main__":
    B, S, F = 2, 8, 32  # batch=2, seq=8, num_features=32
    key = jax.random.PRNGKey(0)
    kx, kg, kb, kbias = jax.random.split(key, 4)

    x = jax.random.normal(kx, (B, S, F), dtype=jnp.float32)
    ln_w = 1.0 + 0.1 * jax.random.normal(kg, (F,), dtype=jnp.float32)
    ln_b = 0.1 * jax.random.normal(kb, (F,), dtype=jnp.float32)
    gate_b = 0.1 * jax.random.normal(kbias, (F,), dtype=jnp.float32)

    out = feature_probability_gate(x, ln_w, ln_b, gate_b)
    out = jax.block_until_ready(out)

    ref = _reference(x, ln_w, ln_b, gate_b)
    assert out.shape == (B, S, F)
    err = float(jnp.max(jnp.abs(out - ref)))
    assert jnp.allclose(out, ref, atol=1e-5, rtol=1e-5), err

    print("KERNEL_OK")
</pallas_src>

<mosaic_0001>
module attributes {stable_mosaic.version = 11 : i64} {
  func.func @_gate_kernel_packed(%arg0: i32, %arg1: memref<4x128xf32, #tpu.memory_space<vmem>>, %arg2: memref<2x128xf32, #tpu.memory_space<vmem>>, %arg3: memref<128x128xbf16, #tpu.memory_space<vmem>>, %arg4: memref<4x128xf32, #tpu.memory_space<vmem>>) attributes {dimension_semantics = [#tpu.dimension_semantics<parallel>], iteration_bounds = array<i64: 1>, scalar_prefetch = 0 : i64, scratch_operands = 0 : i64, tpu.core_type = #tpu.core_type<tc>, window_params = [{transform_indices = @transform_0, window_bounds = array<i64: 4, 128>}, {pipeline_mode = #tpu.pipeline_mode<synchronous>, transform_indices = @transform_1, window_bounds = array<i64: 2, 128>}, {pipeline_mode = #tpu.pipeline_mode<synchronous>, transform_indices = @transform_2, window_bounds = array<i64: 128, 128>}, {transform_indices = @transform_3, window_bounds = array<i64: 4, 128>}]} {
    %c0 = arith.constant 0 : index
    %c0_0 = arith.constant 0 : index
    %0 = vector.load %arg1[%c0, %c0_0] : memref<4x128xf32, #tpu.memory_space<vmem>>, vector<4x128xf32>
    %c0_1 = arith.constant 0 : index
    %c0_2 = arith.constant 0 : index
    %1 = vector.load %arg2[%c0_1, %c0_2] : memref<2x128xf32, #tpu.memory_space<vmem>>, vector<1x128xf32>
    %c1 = arith.constant 1 : index
    %c0_3 = arith.constant 0 : index
    %2 = vector.load %arg2[%c1, %c0_3] : memref<2x128xf32, #tpu.memory_space<vmem>>, vector<1x128xf32>
    %c0_4 = arith.constant 0 : index
    %c0_5 = arith.constant 0 : index
    %3 = vector.load %arg3[%c0_4, %c0_5] : memref<128x128xbf16, #tpu.memory_space<vmem>>, vector<128x128xbf16>
    %4 = arith.truncf %0 : vector<4x128xf32> to vector<4x128xbf16>
    %5 = arith.extf %4 : vector<4x128xbf16> to vector<4x128xf32>
    %6 = arith.subf %0, %5 : vector<4x128xf32>
    %7 = arith.truncf %6 : vector<4x128xf32> to vector<4x128xbf16>
    %cst = arith.constant dense<0.000000e+00> : vector<4x128xf32>
    %8 = tpu.matmul %4, %3, %cst {dimension_numbers = #tpu.dot_dimension_numbers<[1], [0], [0], [1], [0, 0, 1, 1], [], []>} : vector<4x128xbf16>, vector<128x128xbf16>, vector<4x128xf32> -> vector<4x128xf32>
    %cst_6 = arith.constant dense<0.000000e+00> : vector<4x128xf32>
    %9 = tpu.matmul %7, %3, %cst_6 {dimension_numbers = #tpu.dot_dimension_numbers<[1], [0], [0], [1], [0, 0, 1, 1], [], []>} : vector<4x128xbf16>, vector<128x128xbf16>, vector<4x128xf32> -> vector<4x128xf32>
    %10 = arith.addf %8, %9 : vector<4x128xf32>
    %11 = arith.subf %0, %10 : vector<4x128xf32>
    %12 = arith.mulf %11, %11 : vector<4x128xf32>
    %13 = arith.truncf %12 : vector<4x128xf32> to vector<4x128xbf16>
    %14 = arith.extf %13 : vector<4x128xbf16> to vector<4x128xf32>
    %15 = arith.subf %12, %14 : vector<4x128xf32>
    %16 = arith.truncf %15 : vector<4x128xf32> to vector<4x128xbf16>
    %cst_7 = arith.constant dense<0.000000e+00> : vector<4x128xf32>
    %17 = tpu.matmul %13, %3, %cst_7 {dimension_numbers = #tpu.dot_dimension_numbers<[1], [0], [0], [1], [0, 0, 1, 1], [], []>} : vector<4x128xbf16>, vector<128x128xbf16>, vector<4x128xf32> -> vector<4x128xf32>
    %cst_8 = arith.constant dense<0.000000e+00> : vector<4x128xf32>
    %18 = tpu.matmul %16, %3, %cst_8 {dimension_numbers = #tpu.dot_dimension_numbers<[1], [0], [0], [1], [0, 0, 1, 1], [], []>} : vector<4x128xbf16>, vector<128x128xbf16>, vector<4x128xf32> -> vector<4x128xf32>
    %19 = arith.addf %17, %18 : vector<4x128xf32>
    %cst_9 = arith.constant 9.99999974E-6 : f32
    %20 = vector.broadcast %cst_9 : f32 to vector<4x128xf32>
    %21 = arith.addf %19, %20 : vector<4x128xf32>
    %22 = math.rsqrt %21 : vector<4x128xf32>
    %23 = arith.mulf %11, %22 : vector<4x128xf32>
    %24 = vector.broadcast %1 : vector<1x128xf32> to vector<4x128xf32>
    %25 = arith.mulf %23, %24 : vector<4x128xf32>
    %26 = vector.broadcast %2 : vector<1x128xf32> to vector<4x128xf32>
    %27 = arith.addf %25, %26 : vector<4x128xf32>
    %28 = arith.negf %27 : vector<4x128xf32>
    %29 = math.exp %28 : vector<4x128xf32>
    %cst_10 = arith.constant 1.000000e+00 : f32
    %30 = vector.broadcast %cst_10 : f32 to vector<4x128xf32>
    %31 = arith.addf %30, %29 : vector<4x128xf32>
    %32 = arith.divf %30, %31 : vector<4x128xf32>
    %c0_11 = arith.constant 0 : index
    %c0_12 = arith.constant 0 : index
    %33 = vector.load %arg4[%c0_11, %c0_12] : memref<4x128xf32, #tpu.memory_space<vmem>>, vector<4x128xf32>
    tpu.vector_store %arg4[%c0_11, %c0_12], %32 {strides = array<i32>} : memref<4x128xf32, #tpu.memory_space<vmem>>, vector<4x128xf32>,
    return
  }
  func.func @transform_0(%arg0: i32) -> (i32, i32) {
    %c0_i32 = arith.constant 0 : i32
    %c0_i32_0 = arith.constant 0 : i32
    return %arg0, %c0_i32 : i32, i32
  }
  func.func @transform_1(%arg0: i32) -> (i32, i32) {
    %c0_i32 = arith.constant 0 : i32
    %c0_i32_0 = arith.constant 0 : i32
    %c0_i32_1 = arith.constant 0 : i32
    return %c0_i32, %c0_i32_0 : i32, i32
  }
  func.func @transform_2(%arg0: i32) -> (i32, i32) {
    %c0_i32 = arith.constant 0 : i32
    %c0_i32_0 = arith.constant 0 : i32
    %c0_i32_1 = arith.constant 0 : i32
    return %c0_i32, %c0_i32_0 : i32, i32
  }
  func.func @transform_3(%arg0: i32) -> (i32, i32) {
    %c0_i32 = arith.constant 0 : i32
    %c0_i32_0 = arith.constant 0 : i32
    return %arg0, %c0_i32 : i32, i32
  }
}

</mosaic_0001>

<llo_original>
// kernel: tpu_custom_call.1
$region0: #{tpu_custom_call.1}
  #allocation0 [shape = 'u32[]', space=smem, size = 0x4, offset = 0x4, fixed_abs, tag = 'smem constant byte address 0x4 - core index']
  #allocation1 [shape = 'u32[72,128]{1,0:T(1,128)}', space=vmem, size = 0x9000, scoped, tag = 'internal scratch']
  %s0 = inlined_call_operand.hbm [shape: f32[4,128], index: 0, kind: input, shape index: {}]
  %s1 = inlined_call_operand.hbm [shape: f32[2,128], index: 1, kind: input, shape index: {}]
  %s2 = inlined_call_operand.hbm [shape: bf16[128,128], index: 2, kind: input, shape index: {}]
  %s3 = inlined_call_operand.hbm [shape: f32[4,128], index: 3, kind: output, shape index: {}]
  %s4 = sld [smem:[#allocation0]]
  $region34: #{tpu_custom_call.1} parent=0
    _
  %s6 = ssub.s32 1, %s4
  %s7 = scalar_select 0, %s6, %s4
  $region1: #{tpu_custom_call.1} parent=0
    #allocation2 [shape = 'u8[2048]{0}', space=vmem, size = 0x800, scoped, tag = 'input window, operand 0, single buffered']
    #allocation3 [shape = 's32[1]{0}', space=sflag, size = 0x4, scoped, tag = 'scoped memory for tpu_custom_call.1']
    #allocation4 [shape = 's32[1]{0}', space=sflag, size = 0x4, scoped, tag = 'scoped memory for tpu_custom_call.1']
    #allocation5 [shape = 'u8[1024]{0}', space=vmem, size = 0x400, scoped, tag = 'input window, operand 1, single buffered']
    #allocation6 [shape = 's32[1]{0}', space=sflag, size = 0x4, scoped, tag = 'scoped memory for tpu_custom_call.1']
    #allocation7 [shape = 'u8[32768]{0}', space=vmem, size = 0x8000, scoped, tag = 'input window, operand 2, single buffered']
    #allocation8 [shape = 'u8[2048]{0}', space=vmem, size = 0x800, scoped, tag = 'output window, operand 0, single buffered']
    %8 = vsyncpa [#allocation3], 0
    %9 = vsyncpa [#allocation6], 0
    %10 = vsyncpa [#allocation4], 0
    // Predicated region
    $region2: #{tpu_custom_call.1} parent=1 // pred_check
      _
    $region3: #{tpu_custom_call.1} parent=1 // pred_check_branch
      %12 = sbr.rel (0) target = $region5
    $region4: #{tpu_custom_call.1} parent=1 // pred_region
      %14 = vsyncadd [#allocation3], 0
      %s16 = sshll.u32 %s0, 4
      %s17 = int_to_ptr.hbm [resolvable:$true] %s16
      %s18 = sshll.u32 [#allocation2], 4
      %s19 = int_to_ptr.vmem [resolvable:$true] %s18
      %21 = dma.hbm_to_vmem [thread:$0]  %s17, 64, %s19, [#allocation3]
    $region5: #{tpu_custom_call.1} parent=1 // pred_fallthru
      _
    // Predicated region
    $region6: #{tpu_custom_call.1} parent=1 // pred_check
      _
    $region7: #{tpu_custom_call.1} parent=1 // pred_check_branch
      %23 = sbr.rel (0) target = $region9
    $region8: #{tpu_custom_call.1} parent=1 // pred_region
      %25 = vsyncadd [#allocation6], 0
      %s27 = sshll.u32 %s1, 4
      %s28 = int_to_ptr.hbm [resolvable:$true] %s27
      %s29 = sshll.u32 [#allocation5], 4
      %s30 = int_to_ptr.vmem [resolvable:$true] %s29
      %32 = dma.hbm_to_vmem [thread:$0]  %s28, 32, %s30, [#allocation6]
    $region9: #{tpu_custom_call.1} parent=1 // pred_fallthru
      _
    // Predicated region
    $region10: #{tpu_custom_call.1} parent=1 // pred_check
      _
    $region11: #{tpu_custom_call.1} parent=1 // pred_check_branch
      %34 = sbr.rel (0) target = $region13
    $region12: #{tpu_custom_call.1} parent=1 // pred_region
      %36 = vsyncadd [#allocation6], 0
      %s37 = sshll.u32 %s2, 4
      %s38 = int_to_ptr.hbm [resolvable:$true] %s37
      %s39 = sshll.u32 [#allocation7], 4
      %s40 = int_to_ptr.vmem [resolvable:$true] %s39
      %45 = dma.hbm_to_vmem [thread:$0]  %s38, 1024, %s40, [#allocation6], 64, 64, 4
    $region13: #{tpu_custom_call.1} parent=1 // pred_fallthru
      _
    // Predicated region
    $region14: #{tpu_custom_call.1} parent=1 // pred_check
      _
    $region15: #{tpu_custom_call.1} parent=1 // pred_check_branch
      %47 = sbr.rel (0) target = $region17
    $region16: #{tpu_custom_call.1} parent=1 // pred_region
      %49 = dma.done [#allocation3], 64
    $region17: #{tpu_custom_call.1} parent=1 // pred_fallthru
      _
    // Predicated region
    $region18: #{tpu_custom_call.1} parent=1 // pred_check
      _
    $region19: #{tpu_custom_call.1} parent=1 // pred_check_branch
      %51 = sbr.rel (0) target = $region21
    $region20: #{tpu_custom_call.1} parent=1 // pred_region
      %53 = dma.done [#allocation6], 32
    $region21: #{tpu_custom_call.1} parent=1 // pred_fallthru
      _
    // Predicated region
    $region22: #{tpu_custom_call.1} parent=1 // pred_check
      _
    $region23: #{tpu_custom_call.1} parent=1 // pred_check_branch
      %55 = sbr.rel (0) target = $region25
    $region24: #{tpu_custom_call.1} parent=1 // pred_region
      %57 = dma.done [#allocation6], 1024
    $region25: #{tpu_custom_call.1} parent=1 // pred_fallthru
      _
    %v58 = vld [vmem:[#allocation2] sm:$0xf]
    %v59 = vld [vmem:[#allocation5] sm:$0x1]
    %v60 = vld [vmem:[#allocation5 + $0x1] sm:$0x1]
    %v61 = vld [vmem:[#allocation7] sm:$0xf]
    %v62 = vld [vmem:[#allocation7 + $0x4] sm:$0xf]
    %v63 = vld [vmem:[#allocation7 + $0x8] sm:$0xf]
    %v64 = vld [vmem:[#allocation7 + $0xc] sm:$0xf]
    %v65 = vld [vmem:[#allocation7 + $0x10] sm:$0xf]
    %v66 = vld [vmem:[#allocation7 + $0x14] sm:$0xf]
    %v67 = vld [vmem:[#allocation7 + $0x18] sm:$0xf]
    %v68 = vld [vmem:[#allocation7 + $0x1c] sm:$0xf]
    %v69 = vld [vmem:[#allocation7 + $0x20] sm:$0xf]
    %v70 = vld [vmem:[#allocation7 + $0x24] sm:$0xf]
    %v71 = vld [vmem:[#allocation7 + $0x28] sm:$0xf]
    %v72 = vld [vmem:[#allocation7 + $0x2c] sm:$0xf]
    %v73 = vld [vmem:[#allocation7 + $0x30] sm:$0xf]
    %v74 = vld [vmem:[#allocation7 + $0x34] sm:$0xf]
    %v75 = vld [vmem:[#allocation7 + $0x38] sm:$0xf]
    %v76 = vld [vmem:[#allocation7 + $0x3c] sm:$0xf]
    %v77 = vpack.c.bf16 %v58, %v58
    %v78 = vunpack.c.l.bf16 %v77
    %v79 = vsub.f32 %v58, %v78
    %v80 = vpack.c.bf16 %v79, %v79
    %v97 = vunpack.c.l.b16 %v61
    %v98 = vunpack.c.l.b16 %v62
    %v99 = vunpack.c.l.b16 %v63
    %v100 = vunpack.c.l.b16 %v64
    %v101 = vunpack.c.l.b16 %v65
    %v102 = vunpack.c.l.b16 %v66
    %v103 = vunpack.c.l.b16 %v67
    %v104 = vunpack.c.l.b16 %v68
    %v105 = vunpack.c.l.b16 %v69
    %v106 = vunpack.c.l.b16 %v70
    %v107 = vunpack.c.l.b16 %v71
    %v108 = vunpack.c.l.b16 %v72
    %v109 = vunpack.c.l.b16 %v73
    %v110 = vunpack.c.l.b16 %v74
    %v111 = vunpack.c.l.b16 %v75
    %v112 = vunpack.c.l.b16 %v76
    %v113 = vpack.c.b16 %v98, %v97
    %v114 = vpack.c.b16 %v100, %v99
    %v115 = vpack.c.b16 %v102, %v101
    %v116 = vpack.c.b16 %v104, %v103
    %v117 = vpack.c.b16 %v106, %v105
    %v118 = vpack.c.b16 %v108, %v107
    %v119 = vpack.c.b16 %v110, %v109
    %v120 = vpack.c.b16 %v112, %v111
    %129 = vmatpush.bf16.msra.mxu0 %v120
    %130 = vmatpush.bf16.msra.mxu0 %v119
    %131 = vmatpush.bf16.msra.mxu0 %v118
    %132 = vmatpush.bf16.msra.mxu0 %v117
    %133 = vmatpush.bf16.msra.mxu0 %v116
    %134 = vmatpush.bf16.msra.mxu0 %v115
    %135 = vmatpush.bf16.msra.mxu0 %v114
    %136 = vmatpush.bf16.msra.mxu0 %v113
    %137 = vmatmul.bf16.gmra.mxu0 %v80
    %v138 = vpop.f32.mrf.mxu0
    %v139 = vadd.f32 0.0, %v138
    %v140 = vpop.f32.mrf.mxu0
    %141 = vdwg.mxu0
    %142 = vmatpush.bf16.msra.mxu0 %v120
    %143 = vmatpush.bf16.msra.mxu0 %v119
    %144 = vmatpush.bf16.msra.mxu0 %v118
    %145 = vmatpush.bf16.msra.mxu0 %v117
    %146 = vmatpush.bf16.msra.mxu0 %v116
    %147 = vmatpush.bf16.msra.mxu0 %v115
    %148 = vmatpush.bf16.msra.mxu0 %v114
    %149 = vmatpush.bf16.msra.mxu0 %v113
    %150 = vmatmul.bf16.gmra.mxu0 %v77
    %v151 = vpop.f32.mrf.mxu0
    %v152 = vadd.f32 %v139, %v151
    %v153 = vpop.f32.mrf.mxu0
    %154 = vdwg.mxu0
    %v155 = vsub.f32 %v58, %v152
    %v156 = vmul.f32 %v155, %v155
    %v157 = vpack.c.bf16 %v156, %v156
    %v158 = vunpack.c.l.bf16 %v157
    %v159 = vsub.f32 %v156, %v158
    %v160 = vpack.c.bf16 %v159, %v159
    %161 = vmatpush.bf16.msra.mxu0 %v120
    %162 = vmatpush.bf16.msra.mxu0 %v119
    %163 = vmatpush.bf16.msra.mxu0 %v118
    %164 = vmatpush.bf16.msra.mxu0 %v117
    %165 = vmatpush.bf16.msra.mxu0 %v116
    %166 = vmatpush.bf16.msra.mxu0 %v115
    %167 = vmatpush.bf16.msra.mxu0 %v114
    %168 = vmatpush.bf16.msra.mxu0 %v113
    %169 = vmatmul.bf16.gmra.mxu0 %v160
    %v170 = vpop.f32.mrf.mxu0
    %v171 = vadd.f32 0.0, %v170
    %v172 = vpop.f32.mrf.mxu0
    %173 = vdwg.mxu0
    %174 = vmatpush.bf16.msra.mxu0 %v120
    %175 = vmatpush.bf16.msra.mxu0 %v119
    %176 = vmatpush.bf16.msra.mxu0 %v118
    %177 = vmatpush.bf16.msra.mxu0 %v117
    %178 = vmatpush.bf16.msra.mxu0 %v116
    %179 = vmatpush.bf16.msra.mxu0 %v115
    %180 = vmatpush.bf16.msra.mxu0 %v114
    %181 = vmatpush.bf16.msra.mxu0 %v113
    %182 = vmatmul.bf16.gmra.mxu0 %v157
    %v183 = vpop.f32.mrf.mxu0
    %v184 = vadd.f32 %v171, %v183
    %v185 = vpop.f32.mrf.mxu0
    %186 = vdwg.mxu0
    %v187 = vadd.f32 %v184, 1e-05
    %v188 = vrsqrt.pop %v187
    %v189 = vmul.f32 %v188, %v187
    %v190 = vmul.f32 %v189, %v188
    %v191 = vmul.f32 0.5, %v190
    %v192 = vsub.f32 1.5, %v191
    %v193 = vmul.f32 %v188, %v192
    %vm194 = vweird.f32 %v187
    %vm195 = vweird.f32 %v188
    %vm196 = vmor %vm194, %vm195
    %v197 = vsel %vm196, %v188, %v193
    %v198 = vmul.f32 %v155, %v197
    %v199 = vperm.slane %v59, 0
    %v200 = vmul.f32 %v198, %v199
    %v201 = vperm.slane %v60, 0
    %v202 = vadd.f32 %v200, %v201
    %v203 = vxor.u32 %v202, 2147483648
    %v204 = vmul.f32 %v203, 1.442695
    %v205 = vpow.pop %v204
    %v206 = vadd.f32 %v205, 1.0
    %v207 = vrcp.pop %v206
    %v208 = vmul.f32 %v206, %v207
    %v209 = vsub.f32 1.0, %v208
    %v210 = vmul.f32 %v207, %v209
    %v211 = vadd.f32 %v207, %v210
    %vm212 = vweird.f32 %v206
    %vm213 = vweird.f32 %v207
    %vm214 = vmor %vm212, %vm213
    %v215 = vsel %vm214, %v207, %v211
    %v216 = vand.u32 2147483647, %v206
    %vm217 = vcmp.eq.f32.partialorder %v216, 8.507059e+37
    %v218 = vand.u32 %v206, 2147483648
    %v219 = vor.u32 1.1754944e-38, %v218
    %v220 = vsel %vm217, %v219, %v215
    %v221 = vmul.f32 1.0, %v220
    %222 = vst [vmem:[#allocation8] sm:$0xf] %v221
    // Predicated region
    $region26: #{tpu_custom_call.1} parent=1 // pred_check
      _
    $region27: #{tpu_custom_call.1} parent=1 // pred_check_branch
      %224 = sbr.rel (0) target = $region29
    $region28: #{tpu_custom_call.1} parent=1 // pred_region
      %226 = vsyncadd [#allocation4], 0
      %s228 = sshll.u32 [#allocation8], 4
      %s229 = int_to_ptr.vmem [resolvable:$true] %s228
      %s230 = sshll.u32 %s3, 4
      %s231 = int_to_ptr.hbm [resolvable:$true] %s230
      %233 = dma.vmem_to_hbm [thread:$0]  %s229, 64, %s231, [#allocation4]
    $region29: #{tpu_custom_call.1} parent=1 // pred_fallthru
      _
    // Predicated region
    $region30: #{tpu_custom_call.1} parent=1 // pred_check
      _
    $region31: #{tpu_custom_call.1} parent=1 // pred_check_branch
      %235 = sbr.rel (0) target = $region33
    $region32: #{tpu_custom_call.1} parent=1 // pred_region
      %237 = dma.done [#allocation4], 64
    $region33: #{tpu_custom_call.1} parent=1 // pred_fallthru
      _
    %238 = vsyncpa [#allocation3], 1
    %239 = vsyncpa [#allocation6], 1
    %240 = vsyncpa [#allocation4], 1

</llo_original>
